<compile_context>
chip_gen: v5e
topology: v5e:2x2
jax: 0.10.0
libtpu: 0.0.40
codegen_flags: <defaults>
</compile_context>

<pallas_src>
import functools

import jax
import jax.numpy as jnp
from jax.experimental import pallas as pl
from jax.experimental.pallas import tpu as pltpu

_LANE = 128

# Cody-Waite split of pi/2 (cephes single-precision constants, x2) and minimax
# polynomial coefficients for sin/cos on [-pi/4, pi/4].
_TWO_OVER_PI = 0.6366197723675814
_PIO2_A = 1.5703125                      # 201 * 2^-7 (exact); k*A exact for k < 2^16
_PIO2_B = 4.837512969970703125e-4
_PIO2_C = 7.54978995489188216e-8
_S0, _S1, _S2 = -1.9515295891e-4, 8.3321608736e-3, -1.6666654611e-1
_C0, _C1, _C2 = 2.443315711809948e-5, -1.388731625493765e-3, 4.166664568298827e-2


def _sincos(x):
    """f32 sin(x), cos(x) with one shared range reduction (pure VPU work)."""
    kf = jnp.floor(x * _TWO_OVER_PI + 0.5)          # nearest quadrant
    r = x - kf * _PIO2_A
    r = r - kf * _PIO2_B
    r = r - kf * _PIO2_C
    q = kf.astype(jnp.int32)
    z = r * r
    sin_r = ((_S0 * z + _S1) * z + _S2) * z * r + r
    cos_r = ((_C0 * z + _C1) * z + _C2) * (z * z) - 0.5 * z + 1.0
    odd = (q & 1) == 1
    sin_x = jnp.where(odd, cos_r, sin_r)
    cos_x = jnp.where(odd, -sin_r, cos_r)
    flip = (q & 2) == 2
    sin_x = jnp.where(flip, -sin_x, sin_x)
    cos_x = jnp.where(flip, -cos_x, cos_x)
    return sin_x, cos_x


def _pose_geo_kernel(xyz_ref, x_ref, scale_ref, o_ref, *, c_in, feat_dim):
    # xyz_ref   : (bt, c_in, NT)     coordinate tile
    # x_ref     : (bt, out_dim, NT)  feature tile
    # scale_ref : (feat_dim, NT)     beta / alpha^(c/feat_dim), lane-replicated
    # o_ref     : (bt, out_dim, NT)

    # Squared norm over the tiny static coordinate-channel axis, unrolled on
    # the VPU (no cross-sublane reduction).
    r0 = xyz_ref[:, 0:1, :].astype(jnp.float32)
    sq = r0 * r0
    for c in range(1, c_in):
        rc = xyz_ref[:, c:c + 1, :].astype(jnp.float32)
        sq = sq + rc * rc
    dist = jnp.sqrt(sq)                                     # (bt, 1, NT)

    # angle[b, c, l] = scale[c, l] * dist[b, l] (sublane broadcast of dist only;
    # the scale is already lane-dense).
    angle = dist * scale_ref[...][None, :, :]               # (bt, feat_dim, NT)

    # One shared range reduction feeds both trig halves.
    pe_sin, pe_cos = _sincos(angle)

    # sin half: compute and store before touching the cos-half features, to
    # bound the number of live (feat_dim, NT) f32 slabs.
    x_sin = x_ref[:, :feat_dim, :].astype(jnp.float32)
    o_ref[:, :feat_dim, :] = ((x_sin + pe_sin) * pe_sin).astype(o_ref.dtype)
    x_cos = x_ref[:, feat_dim:, :].astype(jnp.float32)
    o_ref[:, feat_dim:, :] = ((x_cos + pe_cos) * pe_cos).astype(o_ref.dtype)


def _round_up(x, m):
    return ((x + m - 1) // m) * m


def _largest_divisor_leq(n, limit):
    limit = max(1, min(limit, n))
    for d in range(limit, 0, -1):
        if n % d == 0:
            return d
    return 1


def pose_geo(knn_xyz, knn_x, alpha, beta, *, n_tile_max=16384):
    """knn_xyz: (B, C_in, G, K); knn_x: (B, out_dim, G, K) -> (B, out_dim, G, K)."""
    B, c_in, G, K = knn_xyz.shape
    _, out_dim, _, _ = knn_x.shape
    assert out_dim % 2 == 0, "out_dim must be even (sin/cos halves)"
    feat_dim = out_dim // 2
    # NOTE: feat_dim that is a multiple of 8 (f32) / 16 (bf16) keeps the
    # half-channel stores on vreg tile boundaries; other values still work but
    # take masked partial stores.
    N = G * K
    n_padded = _round_up(N, _LANE)       # only ever pad to the next 128 boundary

    xyz_bytes = jnp.dtype(knn_xyz.dtype).itemsize
    x_bytes = jnp.dtype(knn_x.dtype).itemsize
    out_dtype = knn_x.dtype
    out_bytes = jnp.dtype(out_dtype).itemsize

    # Per-TensorCore VMEM capacity (v7x: 64 MiB, v5e/v6e: 128 MiB). Budget half
    # of it, capped at 48 MiB, for blocks + in-kernel temporaries.
    try:
        vmem_cap = int(pltpu.get_tpu_info().vmem_capacity_bytes)
    except Exception:
        vmem_cap = 64 << 20              # conservative (smallest shipping VMEM)
    vmem_budget = min(vmem_cap // 2, 48 << 20)

    # VMEM bytes per lane of work in one grid step: double-buffered I/O blocks
    # + live f32 temporaries (angle/pe_sin/pe_cos/trig scratch + one x half +
    # dist) + the lane-replicated scale block.
    io_per_lane = 2 * (c_in * xyz_bytes + out_dim * (x_bytes + out_bytes))
    tmp_per_lane = (6 * feat_dim + c_in + 4) * 4
    scale_per_lane = 2 * feat_dim * 4
    per_lane = io_per_lane + tmp_per_lane + scale_per_lane

    lanes_target = max(
        (min(n_tile_max, vmem_budget // per_lane) // _LANE) * _LANE, _LANE)

    if n_padded <= lanes_target:
        n_tile = n_padded
        b_tile = _largest_divisor_leq(B, max(lanes_target // n_tile, 1))
    else:
        n_tile = _LANE * _largest_divisor_leq(n_padded // _LANE,
                                              lanes_target // _LANE)
        b_tile = 1

    num_b = B // b_tile
    num_n = n_padded // n_tile
    # v7x has 2 TensorCores sharing the parallel grid axes; keep >= 2 grid
    # steps when that is free (harmless on single-TC v5e/v6e).
    if num_b * num_n < 2:
        if B > 1:
            b_tile = _largest_divisor_leq(B, B // 2)
            num_b = B // b_tile
        elif n_tile % 256 == 0:
            n_tile //= 2
            num_n = n_padded // n_tile

    # Parameter-free module: per-channel scale for the sin half (cos half
    # reuses the same angles), pre-replicated along lanes.
    feat_range = jnp.arange(feat_dim, dtype=jnp.float32)
    dim_embed = jnp.power(jnp.float32(alpha), feat_range / feat_dim)
    scale = jnp.broadcast_to((jnp.float32(beta) / dim_embed)[:, None],
                             (feat_dim, n_tile))

    # Keep I/O in the caller's dtype; f32 math in-kernel.
    xyz_f = knn_xyz.reshape(B, c_in, N)
    x_f = knn_x.reshape(B, out_dim, N)
    if n_padded != N:
        pad = n_padded - N
        xyz_f = jnp.pad(xyz_f, ((0, 0), (0, 0), (0, pad)))
        x_f = jnp.pad(x_f, ((0, 0), (0, 0), (0, pad)))

    # Actual VMEM need + headroom (never request the full physical size).
    io_block = b_tile * n_tile * (c_in * xyz_bytes + out_dim * (x_bytes + out_bytes))
    scale_block = feat_dim * n_tile * 4
    tmp_block = b_tile * n_tile * tmp_per_lane
    need = 2 * (io_block + scale_block) + tmp_block
    vmem_limit = min(max(int(need * 1.25) + (4 << 20), 8 << 20), vmem_cap)

    cost = pl.CostEstimate(
        flops=int(B * N * (2 * c_in + 2 + 30 * feat_dim)),
        transcendentals=int(B * N),       # the sqrt; trig is VPU polynomials
        bytes_accessed=int(xyz_f.size * xyz_bytes + x_f.size * x_bytes
                           + B * out_dim * n_padded * out_bytes),
    )

    kernel = functools.partial(_pose_geo_kernel, c_in=c_in, feat_dim=feat_dim)

    out_flat = pl.pallas_call(
        kernel,
        out_shape=jax.ShapeDtypeStruct((B, out_dim, n_padded), out_dtype),
        grid_spec=pltpu.PrefetchScalarGridSpec(
            num_scalar_prefetch=0,
            grid=(num_b, num_n),
            in_specs=[
                pl.BlockSpec((b_tile, c_in, n_tile), lambda b, n: (b, 0, n)),
                pl.BlockSpec((b_tile, out_dim, n_tile), lambda b, n: (b, 0, n)),
                pl.BlockSpec((feat_dim, n_tile), lambda b, n: (0, 0)),
            ],
            out_specs=pl.BlockSpec((b_tile, out_dim, n_tile),
                                   lambda b, n: (b, 0, n)),
        ),
        compiler_params=pltpu.CompilerParams(
            dimension_semantics=("parallel", "parallel"),
            vmem_limit_bytes=vmem_limit,
        ),
        cost_estimate=cost,
    )(xyz_f, x_f, scale)

    if n_padded != N:
        out_flat = out_flat[:, :, :N]
    return out_flat.reshape(B, out_dim, G, K)


def pose_geo_ref(knn_xyz, knn_x, alpha, beta):
    """Pure-JAX reference mirroring the PyTorch forward exactly."""
    B, _, G, K = knn_xyz.shape
    out_dim = knn_x.shape[1]
    feat_dim = out_dim // 2
    feat_range = jnp.arange(feat_dim, dtype=jnp.float32)
    dim_embed = jnp.power(jnp.float32(alpha), feat_range / feat_dim)
    dist_xyz = jnp.sqrt(jnp.sum(knn_xyz.astype(jnp.float32) ** 2, axis=1,
                                keepdims=True))                           # (B,1,G,K)
    dist_xyz = (beta * dist_xyz[..., None]) / dim_embed                   # (B,1,G,K,f)
    sin_embed = jnp.sin(dist_xyz)
    cos_embed = jnp.cos(dist_xyz)
    position_embed = jnp.concatenate([sin_embed, cos_embed], axis=-1)     # (B,1,G,K,2f)
    position_embed = jnp.transpose(position_embed, (0, 1, 4, 2, 3))       # (B,1,2f,G,K)
    position_embed = position_embed.reshape(B, out_dim, G, K)
    knn_x_w = knn_x.astype(jnp.float32) + position_embed
    knn_x_w = knn_x_w * position_embed
    return knn_x_w.astype(knn_x.dtype)


if __name__ == "__main__":
    # Small shapes consistent with the module's forward:
    B, C_in, G, K = 2, 3, 16, 16
    out_dim = 32
    alpha, beta = 1000.0, 100.0

    key = jax.random.PRNGKey(0)
    k1, k2 = jax.random.split(key)
    knn_xyz = jax.random.normal(k1, (B, C_in, G, K), dtype=jnp.float32)
    knn_x = jax.random.normal(k2, (B, out_dim, G, K), dtype=jnp.float32)

    out = pose_geo(knn_xyz, knn_x, alpha, beta)
    out = jax.block_until_ready(out)

    ref = pose_geo_ref(knn_xyz, knn_x, alpha, beta)
    assert out.shape == (B, out_dim, G, K)
    # f32 trig at angles O(beta*||xyz||) ~ O(4e2): a 1-ulp difference in the
    # angle (op-order vs the reference) is ~3e-5 and propagates through
    # (x + 2*pe); allow a small absolute tolerance accordingly.
    assert jnp.allclose(out, ref, atol=2e-4, rtol=2e-4), "mismatch vs reference"

    print("KERNEL_OK")
</pallas_src>

<mosaic_0001>
module attributes {stable_mosaic.version = 11 : i64} {
  func.func @_pose_geo_kernel(%arg0: i32, %arg1: i32, %arg2: memref<1x3x256xf32, #tpu.memory_space<vmem>>, %arg3: memref<1x32x256xf32, #tpu.memory_space<vmem>>, %arg4: memref<16x256xf32, #tpu.memory_space<vmem>>, %arg5: memref<1x32x256xf32, #tpu.memory_space<vmem>>) attributes {dimension_semantics = [#tpu.dimension_semantics<parallel>, #tpu.dimension_semantics<parallel>], iteration_bounds = array<i64: 2, 1>, scalar_prefetch = 0 : i64, scratch_operands = 0 : i64, tpu.core_type = #tpu.core_type<tc>, window_params = [{transform_indices = @transform_0, window_bounds = array<i64: 1, 3, 256>}, {transform_indices = @transform_1, window_bounds = array<i64: 1, 32, 256>}, {pipeline_mode = #tpu.pipeline_mode<synchronous>, transform_indices = @transform_2, window_bounds = array<i64: 16, 256>}, {transform_indices = @transform_3, window_bounds = array<i64: 1, 32, 256>}]} {
    %c0 = arith.constant 0 : index
    %c0_0 = arith.constant 0 : index
    %c0_1 = arith.constant 0 : index
    %0 = vector.load %arg2[%c0, %c0_0, %c0_1] : memref<1x3x256xf32, #tpu.memory_space<vmem>>, vector<1x1x256xf32>
    %1 = arith.mulf %0, %0 : vector<1x1x256xf32>
    %c0_2 = arith.constant 0 : index
    %c1 = arith.constant 1 : index
    %c0_3 = arith.constant 0 : index
    %2 = vector.load %arg2[%c0_2, %c1, %c0_3] : memref<1x3x256xf32, #tpu.memory_space<vmem>>, vector<1x1x256xf32>
    %3 = arith.mulf %2, %2 : vector<1x1x256xf32>
    %4 = arith.addf %1, %3 : vector<1x1x256xf32>
    %c0_4 = arith.constant 0 : index
    %c2 = arith.constant 2 : index
    %c0_5 = arith.constant 0 : index
    %5 = vector.load %arg2[%c0_4, %c2, %c0_5] : memref<1x3x256xf32, #tpu.memory_space<vmem>>, vector<1x1x256xf32>
    %6 = arith.mulf %5, %5 : vector<1x1x256xf32>
    %7 = arith.addf %4, %6 : vector<1x1x256xf32>
    %8 = math.sqrt %7 : vector<1x1x256xf32>
    %c0_6 = arith.constant 0 : index
    %c0_7 = arith.constant 0 : index
    %9 = vector.load %arg4[%c0_6, %c0_7] : memref<16x256xf32, #tpu.memory_space<vmem>>, vector<16x256xf32>
    %10 = vector.shape_cast %9 : vector<16x256xf32> to vector<1x16x256xf32>
    %11 = vector.broadcast %8 : vector<1x1x256xf32> to vector<1x16x256xf32>
    %12 = arith.mulf %11, %10 : vector<1x16x256xf32>
    %cst = arith.constant 0.636619746 : f32
    %13 = vector.broadcast %cst : f32 to vector<1x16x256xf32>
    %14 = arith.mulf %12, %13 : vector<1x16x256xf32>
    %cst_8 = arith.constant 5.000000e-01 : f32
    %15 = vector.broadcast %cst_8 : f32 to vector<1x16x256xf32>
    %16 = arith.addf %14, %15 : vector<1x16x256xf32>
    %17 = math.floor %16 : vector<1x16x256xf32>
    %cst_9 = arith.constant 1.5703125 : f32
    %18 = vector.broadcast %cst_9 : f32 to vector<1x16x256xf32>
    %19 = arith.mulf %17, %18 : vector<1x16x256xf32>
    %20 = arith.subf %12, %19 : vector<1x16x256xf32>
    %cst_10 = arith.constant 4.83751297E-4 : f32
    %21 = vector.broadcast %cst_10 : f32 to vector<1x16x256xf32>
    %22 = arith.mulf %17, %21 : vector<1x16x256xf32>
    %23 = arith.subf %20, %22 : vector<1x16x256xf32>
    %cst_11 = arith.constant 7.549790e-08 : f32
    %24 = vector.broadcast %cst_11 : f32 to vector<1x16x256xf32>
    %25 = arith.mulf %17, %24 : vector<1x16x256xf32>
    %26 = arith.subf %23, %25 : vector<1x16x256xf32>
    %27 = arith.fptosi %17 : vector<1x16x256xf32> to vector<1x16x256xi32>
    %28 = arith.mulf %26, %26 : vector<1x16x256xf32>
    %cst_12 = arith.constant -1.95152956E-4 : f32
    %29 = vector.broadcast %cst_12 : f32 to vector<1x16x256xf32>
    %30 = arith.mulf %29, %28 : vector<1x16x256xf32>
    %cst_13 = arith.constant 0.00833216123 : f32
    %31 = vector.broadcast %cst_13 : f32 to vector<1x16x256xf32>
    %32 = arith.addf %30, %31 : vector<1x16x256xf32>
    %33 = arith.mulf %32, %28 : vector<1x16x256xf32>
    %cst_14 = arith.constant -0.166666552 : f32
    %34 = vector.broadcast %cst_14 : f32 to vector<1x16x256xf32>
    %35 = arith.addf %33, %34 : vector<1x16x256xf32>
    %36 = arith.mulf %35, %28 : vector<1x16x256xf32>
    %37 = arith.mulf %36, %26 : vector<1x16x256xf32>
    %38 = arith.addf %37, %26 : vector<1x16x256xf32>
    %cst_15 = arith.constant 2.44331568E-5 : f32
    %39 = vector.broadcast %cst_15 : f32 to vector<1x16x256xf32>
    %40 = arith.mulf %39, %28 : vector<1x16x256xf32>
    %cst_16 = arith.constant -0.00138873165 : f32
    %41 = vector.broadcast %cst_16 : f32 to vector<1x16x256xf32>
    %42 = arith.addf %40, %41 : vector<1x16x256xf32>
    %43 = arith.mulf %42, %28 : vector<1x16x256xf32>
    %cst_17 = arith.constant 0.0416666456 : f32
    %44 = vector.broadcast %cst_17 : f32 to vector<1x16x256xf32>
    %45 = arith.addf %43, %44 : vector<1x16x256xf32>
    %46 = arith.mulf %28, %28 : vector<1x16x256xf32>
    %47 = arith.mulf %45, %46 : vector<1x16x256xf32>
    %cst_18 = arith.constant 5.000000e-01 : f32
    %48 = vector.broadcast %cst_18 : f32 to vector<1x16x256xf32>
    %49 = arith.mulf %48, %28 : vector<1x16x256xf32>
    %50 = arith.subf %47, %49 : vector<1x16x256xf32>
    %cst_19 = arith.constant 1.000000e+00 : f32
    %51 = vector.broadcast %cst_19 : f32 to vector<1x16x256xf32>
    %52 = arith.addf %50, %51 : vector<1x16x256xf32>
    %c1_i32 = arith.constant 1 : i32
    %53 = vector.broadcast %c1_i32 : i32 to vector<1x16x256xi32>
    %54 = arith.andi %27, %53 : vector<1x16x256xi32>
    %c1_i32_20 = arith.constant 1 : i32
    %55 = vector.broadcast %c1_i32_20 : i32 to vector<1x16x256xi32>
    %56 = arith.cmpi eq, %54, %55 : vector<1x16x256xi32>
    %57 = arith.select %56, %52, %38 : vector<1x16x256xi1>, vector<1x16x256xf32>
    %cst_21 = arith.constant 0.000000e+00 : f32
    %58 = vector.broadcast %cst_21 : f32 to vector<1x16x256xf32>
    %59 = arith.subf %58, %38 : vector<1x16x256xf32>
    %60 = arith.select %56, %59, %52 : vector<1x16x256xi1>, vector<1x16x256xf32>
    %c2_i32 = arith.constant 2 : i32
    %61 = vector.broadcast %c2_i32 : i32 to vector<1x16x256xi32>
    %62 = arith.andi %27, %61 : vector<1x16x256xi32>
    %c2_i32_22 = arith.constant 2 : i32
    %63 = vector.broadcast %c2_i32_22 : i32 to vector<1x16x256xi32>
    %64 = arith.cmpi eq, %62, %63 : vector<1x16x256xi32>
    %cst_23 = arith.constant 0.000000e+00 : f32
    %65 = vector.broadcast %cst_23 : f32 to vector<1x16x256xf32>
    %66 = arith.subf %65, %57 : vector<1x16x256xf32>
    %67 = arith.select %64, %66, %57 : vector<1x16x256xi1>, vector<1x16x256xf32>
    %cst_24 = arith.constant 0.000000e+00 : f32
    %68 = vector.broadcast %cst_24 : f32 to vector<1x16x256xf32>
    %69 = arith.subf %68, %60 : vector<1x16x256xf32>
    %70 = arith.select %64, %69, %60 : vector<1x16x256xi1>, vector<1x16x256xf32>
    %c0_25 = arith.constant 0 : index
    %c0_26 = arith.constant 0 : index
    %c0_27 = arith.constant 0 : index
    %71 = vector.load %arg3[%c0_25, %c0_26, %c0_27] : memref<1x32x256xf32, #tpu.memory_space<vmem>>, vector<1x16x256xf32>
    %72 = arith.addf %71, %67 : vector<1x16x256xf32>
    %73 = arith.mulf %72, %67 : vector<1x16x256xf32>
    %c0_28 = arith.constant 0 : index
    %c0_29 = arith.constant 0 : index
    %c0_30 = arith.constant 0 : index
    %74 = vector.load %arg5[%c0_28, %c0_29, %c0_30] : memref<1x32x256xf32, #tpu.memory_space<vmem>>, vector<1x16x256xf32>
    tpu.vector_store %arg5[%c0_28, %c0_29, %c0_30], %73 {strides = array<i32>} : memref<1x32x256xf32, #tpu.memory_space<vmem>>, vector<1x16x256xf32>,
    %c0_31 = arith.constant 0 : index
    %c16 = arith.constant 16 : index
    %c0_32 = arith.constant 0 : index
    %75 = vector.load %arg3[%c0_31, %c16, %c0_32] : memref<1x32x256xf32, #tpu.memory_space<vmem>>, vector<1x16x256xf32>
    %76 = arith.addf %75, %70 : vector<1x16x256xf32>
    %77 = arith.mulf %76, %70 : vector<1x16x256xf32>
    %c0_33 = arith.constant 0 : index
    %c16_34 = arith.constant 16 : index
    %c0_35 = arith.constant 0 : index
    %78 = vector.load %arg5[%c0_33, %c16_34, %c0_35] : memref<1x32x256xf32, #tpu.memory_space<vmem>>, vector<1x16x256xf32>
    tpu.vector_store %arg5[%c0_33, %c16_34, %c0_35], %77 {strides = array<i32>} : memref<1x32x256xf32, #tpu.memory_space<vmem>>, vector<1x16x256xf32>,
    return
  }
  func.func @transform_0(%arg0: i32, %arg1: i32) -> (i32, i32, i32) {
    %c0_i32 = arith.constant 0 : i32
    %c0_i32_0 = arith.constant 0 : i32
    return %arg0, %c0_i32, %arg1 : i32, i32, i32
  }
  func.func @transform_1(%arg0: i32, %arg1: i32) -> (i32, i32, i32) {
    %c0_i32 = arith.constant 0 : i32
    %c0_i32_0 = arith.constant 0 : i32
    return %arg0, %c0_i32, %arg1 : i32, i32, i32
  }
  func.func @transform_2(%arg0: i32, %arg1: i32) -> (i32, i32) {
    %c0_i32 = arith.constant 0 : i32
    %c0_i32_0 = arith.constant 0 : i32
    %c0_i32_1 = arith.constant 0 : i32
    return %c0_i32, %c0_i32_0 : i32, i32
  }
  func.func @transform_3(%arg0: i32, %arg1: i32) -> (i32, i32, i32) {
    %c0_i32 = arith.constant 0 : i32
    %c0_i32_0 = arith.constant 0 : i32
    return %arg0, %c0_i32, %arg1 : i32, i32, i32
  }
}

</mosaic_0001>

<llo_original>
// kernel: tpu_custom_call.1
$region0: #{tpu_custom_call.1}
  #allocation0 [shape = 'u32[]', space=smem, size = 0x4, offset = 0x4, fixed_abs, tag = 'smem constant byte address 0x4 - core index']
  #allocation1 [shape = 'u32[72,128]{1,0:T(1,128)}', space=vmem, size = 0x9000, scoped, tag = 'internal scratch']
  %s0 = inlined_call_operand.vmem [shape: f32[2,3,256], index: 0, kind: input, shape index: {}]
  %s1 = inlined_call_operand.hbm [shape: f32[2,32,256], index: 1, kind: input, shape index: {}]
  %s2 = inlined_call_operand.hbm [shape: f32[16,256], index: 2, kind: input, shape index: {}]
  %s3 = inlined_call_operand.hbm [shape: f32[2,32,256], index: 3, kind: output, shape index: {}]
  %s4 = sld [smem:[#allocation0]]
  $region53: #{tpu_custom_call.1} parent=0
    _
  %s6 = ssub.s32 1, %s4
  %s7 = scalar_select 0, %s6, %s4
  $region1: #{tpu_custom_call.1} parent=0
    #allocation2 [shape = 'u8[65536]{0}', space=vmem, size = 0x10000, scoped, tag = 'input window, operand 1']
    #allocation3 [shape = 's32[2]{0}', space=sflag, size = 0x8, scoped, tag = 'scoped memory for tpu_custom_call.1']
    #allocation4 [shape = 's32[2]{0}', space=sflag, size = 0x8, scoped, tag = 'scoped memory for tpu_custom_call.1']
    #allocation5 [shape = 'u8[16384]{0}', space=vmem, size = 0x4000, scoped, tag = 'input window, operand 2, single buffered']
    #allocation6 [shape = 's32[1]{0}', space=sflag, size = 0x4, scoped, tag = 'scoped memory for tpu_custom_call.1']
    #allocation7 [shape = 'u8[65536]{0}', space=vmem, size = 0x10000, scoped, tag = 'output window, operand 0']
    %8 = vsyncpa [#allocation3], 0
    %s9 = scalar_lea.sflag [#allocation3], 1
    %10 = vsyncpa %s9, 0
    %11 = vsyncpa [#allocation6], 0
    %12 = vsyncpa [#allocation4], 0
    %s13 = scalar_lea.sflag [#allocation4], 1
    %14 = vsyncpa %s13, 0
    loop: start=0, step=1, limit=4
    $region2: #{tpu_custom_call.1} parent=1 // loop_pre_header
      _
    $region3: #{tpu_custom_call.1} parent=1 // loop_header
      %s16 = sphi 0, %s20
      %p17 = scmp.ge.s32.totalorder %s16, 4
      %s23 = sphi 0, %s35
      %s24 = sphi 0, %s31
      %s25 = sphi 0, %s23
      %s26 = sphi 0, %s24
      %s27 = sphi 0, %s25
      %s28 = sphi 0, %s26
      %s40 = sphi 0, %s42
      %s43 = sphi 0, %s40
      %s44 = sphi 0, %s43
      %s60 = sphi 0, %s44
      %s68 = sphi 0, %s70
      %s71 = sphi 0, %s68
      %s72 = sphi 0, %s71
      %s88 = sphi 0, %s72
      %s92 = sphi 0, %s92
      %s94 = sphi 0, %s92
      %s95 = sphi 0, %s94
      %s109 = sphi 0, %s95
      %s117 = sphi 0, %s119
      %s120 = sphi 0, %s117
      %s121 = sphi 0, %s120
      %s137 = sphi 0, %s121
    $region4: #{tpu_custom_call.1} parent=1 // loop_header_branch
      %19 = sbr.rel (%p17) target = $region8
    $region5: #{tpu_custom_call.1} parent=1 // loop_body
      %s21 = ssub.s32 %s16, 1
      %s22 = ssub.s32 %s16, 2
      %s29 = sadd.s32 1, %s24
      %p30 = scmp.ge.s32.totalorder %s29, 1
      %s31 = scalar_select %p30, 0, %s29
      %s32 = sadd.s32 1, %s23
      %s33 = scalar_select %p30, %s32, %s23
      %p34 = scmp.ge.s32.totalorder %s33, 2
      %s35 = scalar_select %p34, 0, %s33
      %s36 = ssub.s32 %s23, %s35
      %s37 = ssub.s32 %s24, %s31
      %s38 = sor.u32 %s36, %s37
      %p39 = scmp.eq.s32.totalorder %s38, 0
      %s41 = sadd.s32 %s40, 1
      %s42 = scalar_select %p39, %s40, %s41
      %p45 = pneg %p39
      %p46 = scmp.eq.s32.totalorder %s16, 1
      %p47 = por %p45, %p46
      %p48 = scmp.ne.s32.totalorder %s40, %s43
      %p49 = scmp.eq.s32.totalorder %s16, 0
      %p50 = por %p48, %p49
      %p51 = scmp.ne.s32.totalorder %s40, %s43
      %p52 = scmp.eq.s32.totalorder %s21, 1
      %p53 = por %p51, %p52
      %p54 = scmp.ne.s32.totalorder %s43, %s44
      %p55 = scmp.eq.s32.totalorder %s21, 0
      %p56 = por %p54, %p55
      %p57 = scmp.ne.s32.totalorder %s43, %s44
      %p58 = scmp.eq.s32.totalorder %s22, 1
      %p59 = por %p57, %p58
      %p61 = scmp.ne.s32.totalorder %s44, %s60
      %p62 = scmp.eq.s32.totalorder %s22, 0
      %p63 = por %p61, %p62
      %s64 = ssub.s32 %s23, %s35
      %s65 = ssub.s32 %s24, %s31
      %s66 = sor.u32 %s64, %s65
      %p67 = scmp.eq.s32.totalorder %s66, 0
      %s69 = sadd.s32 %s68, 1
      %s70 = scalar_select %p67, %s68, %s69
      %p73 = pneg %p67
      %p74 = scmp.eq.s32.totalorder %s16, 1
      %p75 = por %p73, %p74
      %p76 = scmp.ne.s32.totalorder %s68, %s71
      %p77 = scmp.eq.s32.totalorder %s16, 0
      %p78 = por %p76, %p77
      %p79 = scmp.ne.s32.totalorder %s68, %s71
      %p80 = scmp.eq.s32.totalorder %s21, 1
      %p81 = por %p79, %p80
      %p82 = scmp.ne.s32.totalorder %s71, %s72
      %p83 = scmp.eq.s32.totalorder %s21, 0
      %p84 = por %p82, %p83
      %p85 = scmp.ne.s32.totalorder %s71, %s72
      %p86 = scmp.eq.s32.totalorder %s22, 1
      %p87 = por %p85, %p86
      %p89 = scmp.ne.s32.totalorder %s72, %s88
      %p90 = scmp.eq.s32.totalorder %s22, 0
      %p91 = por %p89, %p90
      %s93 = sadd.s32 %s92, 1
      %p96 = scmp.eq.s32.totalorder %s16, 1
      %p97 = scmp.ne.s32.totalorder %s92, %s94
      %p98 = scmp.eq.s32.totalorder %s16, 0
      %p99 = por %p97, %p98
      %p100 = scmp.ne.s32.totalorder %s92, %s94
      %p101 = scmp.eq.s32.totalorder %s21, 1
      %p102 = por %p100, %p101
      %p103 = scmp.ne.s32.totalorder %s94, %s95
      %p104 = scmp.eq.s32.totalorder %s21, 0
      %p105 = por %p103, %p104
      %p106 = scmp.ne.s32.totalorder %s94, %s95
      %p107 = scmp.eq.s32.totalorder %s22, 1
      %p108 = por %p106, %p107
      %p110 = scmp.ne.s32.totalorder %s95, %s109
      %p111 = scmp.eq.s32.totalorder %s22, 0
      %p112 = por %p110, %p111
      %s113 = ssub.s32 %s23, %s35
      %s114 = ssub.s32 %s24, %s31
      %s115 = sor.u32 %s113, %s114
      %p116 = scmp.eq.s32.totalorder %s115, 0
      %s118 = sadd.s32 %s117, 1
      %s119 = scalar_select %p116, %s117, %s118
      %p122 = pneg %p116
      %p123 = scmp.eq.s32.totalorder %s16, 1
      %p124 = por %p122, %p123
      %p125 = scmp.ne.s32.totalorder %s117, %s120
      %p126 = scmp.eq.s32.totalorder %s16, 0
      %p127 = por %p125, %p126
      %p128 = scmp.ne.s32.totalorder %s117, %s120
      %p129 = scmp.eq.s32.totalorder %s21, 1
      %p130 = por %p128, %p129
      %p131 = scmp.ne.s32.totalorder %s120, %s121
      %p132 = scmp.eq.s32.totalorder %s21, 0
      %p133 = por %p131, %p132
      %p134 = scmp.ne.s32.totalorder %s120, %s121
      %p135 = scmp.eq.s32.totalorder %s22, 1
      %p136 = por %p134, %p135
      %p138 = scmp.ne.s32.totalorder %s121, %s137
      %p139 = scmp.eq.s32.totalorder %s22, 0
      %p140 = por %p138, %p139
      %p141 = scmp.le.s32.totalorder 1, %s16
      %p142 = scmp.lt.s32.totalorder %s16, 3
      %p143 = pnand %p141, %p142
      %p144 = pneg %p143
      // Predicated region
      $region9: #{tpu_custom_call.1} parent=5 // pred_check
        _
      $region10: #{tpu_custom_call.1} parent=5 // pred_check_branch
        %146 = sbr.rel (%p143) target = $region12
      $region11: #{tpu_custom_call.1} parent=5 // pred_region
        %s147 = ssub.s32 %s16, 1
        // Predicated region
        $region13: #{tpu_custom_call.1} parent=11 // pred_check
          %p148 = pneg %p105
        $region14: #{tpu_custom_call.1} parent=11 // pred_check_branch
          %150 = sbr.rel (%p148) target = $region16
        $region15: #{tpu_custom_call.1} parent=11 // pred_region
          %152 = vsyncadd [#allocation6], 0
          %s153 = sshll.u32 %s2, 4
          %s154 = int_to_ptr.hbm [resolvable:$true] %s153
          %s155 = sshll.u32 [#allocation5], 4
          %s156 = int_to_ptr.vmem [resolvable:$true] %s155
          %161 = dma.hbm_to_vmem [thread:$0]  %s154, 512, %s156, [#allocation6], 256, 256, 16
        $region16: #{tpu_custom_call.1} parent=11 // pred_fallthru
          _
      $region12: #{tpu_custom_call.1} parent=5 // pred_fallthru
        _
      %p162 = scmp.lt.s32.totalorder %s16, 2
      // Predicated region
      $region17: #{tpu_custom_call.1} parent=5 // pred_check
        %p163 = pneg %p162
      $region18: #{tpu_custom_call.1} parent=5 // pred_check_branch
        %165 = sbr.rel (%p163) target = $region20
      $region19: #{tpu_custom_call.1} parent=5 // pred_region
        // Predicated region
        $region21: #{tpu_custom_call.1} parent=19 // pred_check
          %p166 = pneg %p50
        $region22: #{tpu_custom_call.1} parent=19 // pred_check_branch
          %168 = sbr.rel (%p166) target = $region24
        $region23: #{tpu_custom_call.1} parent=19 // pred_region
          %s169 = smul.u32 2, %s24
          %p170 = scmp.lt.s32.totalorder %s23, 1
          %s171 = scalar_select %p170, %s23, 1
          %p172 = scmp.lt.s32.totalorder %s169, 1
          %s173 = scalar_select %p172, %s169, 1
          %s174 = smul.addr %s171, 2
          %s175 = sadd.s32 %s173, %s174
          %s176 = smul.addr %s175, 4
          %s177 = scalar_lea.vmem %s0, %s176
          %s178 = smul.u32 2, %s24
        $region24: #{tpu_custom_call.1} parent=19 // pred_fallthru
          _
        // Predicated region
        $region25: #{tpu_custom_call.1} parent=19 // pred_check
          %p179 = pneg %p78
        $region26: #{tpu_custom_call.1} parent=19 // pred_check_branch
          %181 = sbr.rel (%p179) target = $region28
        $region27: #{tpu_custom_call.1} parent=19 // pred_region
          %s182 = sand.u32 %s68, 1
          %s183 = scalar_lea.sflag [#allocation3], %s182
          %s184 = sand.u32 %s68, 1
          %s185 = smul.addr %s184, 64
          %s186 = scalar_lea.vmem [#allocation2], %s185
          %s187 = smul.u32 2, %s24
          %189 = vsyncadd %s183, 0
          %s190 = smul.addr %s23, 8
          %s191 = sadd.s32 %s187, %s190
          %s192 = smul.addr %s191, 8
          %s193 = scalar_lea.hbm %s1, %s192
          %s194 = sshll.u32 %s193, 4
          %s195 = int_to_ptr.hbm [resolvable:$true] %s194
          %s196 = sshll.u32 %s186, 4
          %s197 = int_to_ptr.vmem [resolvable:$true] %s196
          %202 = dma.hbm_to_vmem [thread:$0]  %s195, 1024, %s197, %s183, 256, 256, 16
        $region28: #{tpu_custom_call.1} parent=19 // pred_fallthru
          _
      $region20: #{tpu_custom_call.1} parent=5 // pred_fallthru
        _
      %p203 = scmp.le.s32.totalorder 1, %s16
      %p204 = scmp.lt.s32.totalorder %s16, 3
      %p205 = pnand %p203, %p204
      %p206 = pneg %p205
      // Predicated region
      $region29: #{tpu_custom_call.1} parent=5 // pred_check
        _
      $region30: #{tpu_custom_call.1} parent=5 // pred_check_branch
        %208 = sbr.rel (%p205) target = $region32
      $region31: #{tpu_custom_call.1} parent=5 // pred_region
        %s209 = ssub.s32 %s16, 1
        %s210 = sand.u32 %s71, 1
        %s211 = scalar_lea.sflag [#allocation3], %s210
        %s212 = sand.u32 %s71, 1
        %s213 = smul.addr %s212, 64
        %s214 = scalar_lea.vmem [#allocation2], %s213
        // Predicated region
        $region33: #{tpu_custom_call.1} parent=31 // pred_check
          %p215 = pneg %p84
        $region34: #{tpu_custom_call.1} parent=31 // pred_check_branch
          %217 = sbr.rel (%p215) target = $region36
        $region35: #{tpu_custom_call.1} parent=31 // pred_region
          %219 = dma.done %s211, 1024
        $region36: #{tpu_custom_call.1} parent=31 // pred_fallthru
          _
        // Predicated region
        $region37: #{tpu_custom_call.1} parent=31 // pred_check
          %p220 = pneg %p105
        $region38: #{tpu_custom_call.1} parent=31 // pred_check_branch
          %222 = sbr.rel (%p220) target = $region40
        $region39: #{tpu_custom_call.1} parent=31 // pred_region
          %224 = dma.done [#allocation6], 512
        $region40: #{tpu_custom_call.1} parent=31 // pred_fallthru
          _
        %s225 = smul.u32 2, %s26
        %p226 = scmp.lt.s32.totalorder %s25, 1
        %s227 = scalar_select %p226, %s25, 1
        %p228 = scmp.lt.s32.totalorder %s225, 1
        %s229 = scalar_select %p228, %s225, 1
        %s230 = smul.addr %s227, 2
        %s231 = sadd.s32 %s229, %s230
        %s232 = smul.addr %s231, 4
        %s233 = scalar_lea.vmem %s0, %s232
        %p234 = pneg %p56
        %p235 = pneg %p53
        %s236 = sand.u32 %s71, 1
        %s237 = scalar_lea.sflag [#allocation3], %s236
        %s238 = sand.u32 %s71, 1
        %s239 = smul.addr %s238, 64
        %s240 = scalar_lea.vmem [#allocation2], %s239
        %p241 = pneg %p84
        %p242 = pneg %p81
        %p243 = pneg %p105
        %p244 = pneg %p102
        %p245 = pneg %p133
        %p246 = pneg %p130
        %s247 = sand.u32 %s120, 1
        %s248 = scalar_lea.sflag [#allocation4], %s247
        %s249 = sand.u32 %s120, 1
        %s250 = smul.addr %s249, 64
        %s251 = scalar_lea.vmem [#allocation7], %s250
        %s252 = smul.u32 2, %s26
        %p253 = scmp.lt.s32.totalorder %s25, 1
        %s254 = scalar_select %p253, %s25, 1
        %p255 = scmp.lt.s32.totalorder %s252, 1
        %s256 = scalar_select %p255, %s252, 1
        %s257 = smul.addr %s254, 2
        %s258 = sadd.s32 %s256, %s257
        %s259 = smul.addr %s258, 4
        %s260 = scalar_lea.vmem %s0, %s259
        %s261 = smul.u32 2, %s26
        %s262 = smul.u32 2, %s26
        %s263 = smul.u32 2, %s26
        %v264 = vld [vmem:[%s260] ss:$4 sm:$0x3]
        %v265 = vmul.f32 %v264, %v264
        %s266 = scalar_lea.vmem %s260, 1
        %v267 = vld [vmem:[%s266] ss:$4 sm:$0x3]
        %v268 = vmul.f32 %v267, %v267
        %v269 = vadd.f32 %v265, %v268
        %s270 = scalar_lea.vmem %s260, 2
        %v271 = vld [vmem:[%s270] ss:$4 sm:$0x3]
        %v272 = vmul.f32 %v271, %v271
        %v273 = vadd.f32 %v269, %v272
        %v274 = vrsqrt.pop %v273
        %v275 = vmul.f32 %v274, %v273
        %v276 = vmul.f32 %v275, %v274
        %v277 = vmul.f32 0.5, %v276
        %v278 = vsub.f32 1.5, %v277
        %v279 = vmul.f32 %v274, %v278
        %v280 = vmul.f32 %v273, %v279
        %vm281 = vcmp.eq.f32.partialorder %v273, inf
        %v282 = vsel %vm281, %v273, %v280
        %vm283 = vcmp.eq.f32.partialorder %v273, 0.0
        %v284 = vand.u32 %v273, 2147483648
        %v285 = vsel %vm283, %v284, %v282
        %v286 = vld [vmem:[#allocation5] sm:$0xff]
        %v287 = vld [vmem:[#allocation5 + $0x8] sm:$0xff]
        %v288 = vld [vmem:[#allocation5 + $0x10] sm:$0xff]
        %v289 = vld [vmem:[#allocation5 + $0x18] sm:$0xff]
        %v291 = vperm.slane %v285, 0
        %v292 = vperm.slane %v285, 1
        %v295 = vmul.f32 %v291, %v286
        %v296 = vmul.f32 %v292, %v287
        %v297 = vmul.f32 %v291, %v288
        %v298 = vmul.f32 %v292, %v289
        %v299 = vmul.f32 %v295, 0.63661975
        %v300 = vmul.f32 %v296, 0.63661975
        %v301 = vmul.f32 %v297, 0.63661975
        %v302 = vmul.f32 %v298, 0.63661975
        %v303 = vadd.f32 %v299, 0.5
        %v304 = vadd.f32 %v300, 0.5
        %v305 = vadd.f32 %v301, 0.5
        %v306 = vadd.f32 %v302, 0.5
        %v307 = vfloor.f32 %v303
        %v308 = vfloor.f32 %v304
        %v309 = vfloor.f32 %v305
        %v310 = vfloor.f32 %v306
        %v311 = vmul.f32 %v307, 1.5703125
        %v312 = vmul.f32 %v308, 1.5703125
        %v313 = vmul.f32 %v309, 1.5703125
        %v314 = vmul.f32 %v310, 1.5703125
        %v315 = vsub.f32 %v295, %v311
        %v316 = vsub.f32 %v296, %v312
        %v317 = vsub.f32 %v297, %v313
        %v318 = vsub.f32 %v298, %v314
        %v319 = vmul.f32 %v307, 0.0004837513
        %v320 = vmul.f32 %v308, 0.0004837513
        %v321 = vmul.f32 %v309, 0.0004837513
        %v322 = vmul.f32 %v310, 0.0004837513
        %v323 = vsub.f32 %v315, %v319
        %v324 = vsub.f32 %v316, %v320
        %v325 = vsub.f32 %v317, %v321
        %v326 = vsub.f32 %v318, %v322
        %v327 = vmul.f32 %v307, 7.54979e-08
        %v328 = vmul.f32 %v308, 7.54979e-08
        %v329 = vmul.f32 %v309, 7.54979e-08
        %v330 = vmul.f32 %v310, 7.54979e-08
        %v331 = vsub.f32 %v323, %v327
        %v332 = vsub.f32 %v324, %v328
        %v333 = vsub.f32 %v325, %v329
        %v334 = vsub.f32 %v326, %v330
        %v335 = vcvt.f32.s32.to.zero.pseudo %v307
        %v336 = vcvt.f32.s32.to.zero.pseudo %v308
        %v337 = vcvt.f32.s32.to.zero.pseudo %v309
        %v338 = vcvt.f32.s32.to.zero.pseudo %v310
        %v339 = vmul.f32 %v331, %v331
        %v340 = vmul.f32 %v332, %v332
        %v341 = vmul.f32 %v333, %v333
        %v342 = vmul.f32 %v334, %v334
        %v343 = vmul.f32 %v339, -0.00019515296
        %v344 = vmul.f32 %v340, -0.00019515296
        %v345 = vmul.f32 %v341, -0.00019515296
        %v346 = vmul.f32 %v342, -0.00019515296
        %v347 = vadd.f32 %v343, 0.008332161
        %v348 = vadd.f32 %v344, 0.008332161
        %v349 = vadd.f32 %v345, 0.008332161
        %v350 = vadd.f32 %v346, 0.008332161
        %v351 = vmul.f32 %v347, %v339
        %v352 = vmul.f32 %v348, %v340
        %v353 = vmul.f32 %v349, %v341
        %v354 = vmul.f32 %v350, %v342
        %v355 = vadd.f32 %v351, -0.16666655
        %v356 = vadd.f32 %v352, -0.16666655
        %v357 = vadd.f32 %v353, -0.16666655
        %v358 = vadd.f32 %v354, -0.16666655
        %v359 = vmul.f32 %v355, %v339
        %v360 = vmul.f32 %v356, %v340
        %v361 = vmul.f32 %v357, %v341
        %v362 = vmul.f32 %v358, %v342
        %v363 = vmul.f32 %v359, %v331
        %v364 = vmul.f32 %v360, %v332
        %v365 = vmul.f32 %v361, %v333
        %v366 = vmul.f32 %v362, %v334
        %v367 = vadd.f32 %v363, %v331
        %v368 = vadd.f32 %v364, %v332
        %v369 = vadd.f32 %v365, %v333
        %v370 = vadd.f32 %v366, %v334
        %v371 = vmul.f32 %v339, 2.4433157e-05
        %v372 = vmul.f32 %v340, 2.4433157e-05
        %v373 = vmul.f32 %v341, 2.4433157e-05
        %v374 = vmul.f32 %v342, 2.4433157e-05
        %v375 = vadd.f32 %v371, -0.0013887316
        %v376 = vadd.f32 %v372, -0.0013887316
        %v377 = vadd.f32 %v373, -0.0013887316
        %v378 = vadd.f32 %v374, -0.0013887316
        %v379 = vmul.f32 %v375, %v339
        %v380 = vmul.f32 %v376, %v340
        %v381 = vmul.f32 %v377, %v341
        %v382 = vmul.f32 %v378, %v342
        %v383 = vadd.f32 %v379, 0.041666646
        %v384 = vadd.f32 %v380, 0.041666646
        %v385 = vadd.f32 %v381, 0.041666646
        %v386 = vadd.f32 %v382, 0.041666646
        %v387 = vmul.f32 %v339, %v339
        %v388 = vmul.f32 %v340, %v340
        %v389 = vmul.f32 %v341, %v341
        %v390 = vmul.f32 %v342, %v342
        %v391 = vmul.f32 %v383, %v387
        %v392 = vmul.f32 %v384, %v388
        %v393 = vmul.f32 %v385, %v389
        %v394 = vmul.f32 %v386, %v390
        %v395 = vmul.f32 %v339, 0.5
        %v396 = vmul.f32 %v340, 0.5
        %v397 = vmul.f32 %v341, 0.5
        %v398 = vmul.f32 %v342, 0.5
        %v399 = vsub.f32 %v391, %v395
        %v400 = vsub.f32 %v392, %v396
        %v401 = vsub.f32 %v393, %v397
        %v402 = vsub.f32 %v394, %v398
        %v403 = vadd.f32 %v399, 1.0
        %v404 = vadd.f32 %v400, 1.0
        %v405 = vadd.f32 %v401, 1.0
        %v406 = vadd.f32 %v402, 1.0
        %v407 = vand.u32 %v335, 1
        %v408 = vand.u32 %v336, 1
        %v409 = vand.u32 %v337, 1
        %v410 = vand.u32 %v338, 1
        %vm411 = vcmp.eq.s32.totalorder %v407, 1
        %vm412 = vcmp.eq.s32.totalorder %v408, 1
        %vm413 = vcmp.eq.s32.totalorder %v409, 1
        %vm414 = vcmp.eq.s32.totalorder %v410, 1
        %v415 = vsel %vm411, %v403, %v367
        %v416 = vsel %vm412, %v404, %v368
        %v417 = vsel %vm413, %v405, %v369
        %v418 = vsel %vm414, %v406, %v370
        %v419 = vsub.f32 0.0, %v367
        %v420 = vsub.f32 0.0, %v368
        %v421 = vsub.f32 0.0, %v369
        %v422 = vsub.f32 0.0, %v370
        %v423 = vsel %vm411, %v419, %v403
        %v424 = vsel %vm412, %v420, %v404
        %v425 = vsel %vm413, %v421, %v405
        %v426 = vsel %vm414, %v422, %v406
        %v427 = vand.u32 %v335, 2
        %v428 = vand.u32 %v336, 2
        %v429 = vand.u32 %v337, 2
        %v430 = vand.u32 %v338, 2
        %vm431 = vcmp.eq.s32.totalorder %v427, 2
        %vm432 = vcmp.eq.s32.totalorder %v428, 2
        %vm433 = vcmp.eq.s32.totalorder %v429, 2
        %vm434 = vcmp.eq.s32.totalorder %v430, 2
        %v435 = vsub.f32 0.0, %v415
        %v436 = vsub.f32 0.0, %v416
        %v437 = vsub.f32 0.0, %v417
        %v438 = vsub.f32 0.0, %v418
        %v439 = vsel %vm431, %v435, %v415
        %v440 = vsel %vm432, %v436, %v416
        %v441 = vsel %vm433, %v437, %v417
        %v442 = vsel %vm434, %v438, %v418
        %v443 = vsub.f32 0.0, %v423
        %v444 = vsub.f32 0.0, %v424
        %v445 = vsub.f32 0.0, %v425
        %v446 = vsub.f32 0.0, %v426
        %v447 = vsel %vm431, %v443, %v423
        %v448 = vsel %vm432, %v444, %v424
        %v449 = vsel %vm433, %v445, %v425
        %v450 = vsel %vm434, %v446, %v426
        %v451 = vld [vmem:[%s214] sm:$0xff]
        %v452 = vld [vmem:[%s214 + $0x8] sm:$0xff]
        %v453 = vld [vmem:[%s214 + $0x10] sm:$0xff]
        %v454 = vld [vmem:[%s214 + $0x18] sm:$0xff]
        %v455 = vadd.f32 %v451, %v439
        %v456 = vadd.f32 %v452, %v440
        %v457 = vadd.f32 %v453, %v441
        %v458 = vadd.f32 %v454, %v442
        %v459 = vmul.f32 %v455, %v439
        %v460 = vmul.f32 %v456, %v440
        %v461 = vmul.f32 %v457, %v441
        %v462 = vmul.f32 %v458, %v442
        %463 = vst [vmem:[%s251] sm:$0xff] %v459
        %464 = vst [vmem:[%s251 + $0x8] sm:$0xff] %v460
        %465 = vst [vmem:[%s251 + $0x10] sm:$0xff] %v461
        %466 = vst [vmem:[%s251 + $0x18] sm:$0xff] %v462
        %v467 = vld [vmem:[%s214 + $0x20] sm:$0xff]
        %v468 = vld [vmem:[%s214 + $0x28] sm:$0xff]
        %v469 = vld [vmem:[%s214 + $0x30] sm:$0xff]
        %v470 = vld [vmem:[%s214 + $0x38] sm:$0xff]
        %v471 = vadd.f32 %v467, %v447
        %v472 = vadd.f32 %v468, %v448
        %v473 = vadd.f32 %v469, %v449
        %v474 = vadd.f32 %v470, %v450
        %v475 = vmul.f32 %v471, %v447
        %v476 = vmul.f32 %v472, %v448
        %v477 = vmul.f32 %v473, %v449
        %v478 = vmul.f32 %v474, %v450
        %479 = vst [vmem:[%s251 + $0x20] sm:$0xff] %v475
        %480 = vst [vmem:[%s251 + $0x28] sm:$0xff] %v476
        %481 = vst [vmem:[%s251 + $0x30] sm:$0xff] %v477
        %482 = vst [vmem:[%s251 + $0x38] sm:$0xff] %v478
        %s483 = sand.u32 %s120, 1
        %s484 = scalar_lea.sflag [#allocation4], %s483
        %s485 = sand.u32 %s120, 1
        %s486 = smul.addr %s485, 64
        %s487 = scalar_lea.vmem [#allocation7], %s486
        // Predicated region
        $region41: #{tpu_custom_call.1} parent=31 // pred_check
          %p488 = pneg %p130
        $region42: #{tpu_custom_call.1} parent=31 // pred_check_branch
          %490 = sbr.rel (%p488) target = $region44
        $region43: #{tpu_custom_call.1} parent=31 // pred_region
          %s491 = smul.u32 2, %s26
          %493 = vsyncadd %s484, 0
          %s494 = smul.addr %s25, 8
          %s495 = sadd.s32 %s491, %s494
          %s496 = smul.addr %s495, 8
          %s497 = scalar_lea.hbm %s3, %s496
          %s498 = sshll.u32 %s487, 4
          %s499 = int_to_ptr.vmem [resolvable:$true] %s498
          %s500 = sshll.u32 %s497, 4
          %s501 = int_to_ptr.hbm [resolvable:$true] %s500
          %506 = dma.vmem_to_hbm [thread:$0]  %s499, 1024, %s501, %s484, 256, 256, 16
        $region44: #{tpu_custom_call.1} parent=31 // pred_fallthru
          _
      $region32: #{tpu_custom_call.1} parent=5 // pred_fallthru
        _
      %p507 = scmp.le.s32.totalorder 2, %s16
      // Predicated region
      $region45: #{tpu_custom_call.1} parent=5 // pred_check
        %p508 = pneg %p507
      $region46: #{tpu_custom_call.1} parent=5 // pred_check_branch
        %510 = sbr.rel (%p508) target = $region48
      $region47: #{tpu_custom_call.1} parent=5 // pred_region
        %s511 = ssub.s32 %s16, 2
        // Predicated region
        $region49: #{tpu_custom_call.1} parent=47 // pred_check
          %p512 = pneg %p136
        $region50: #{tpu_custom_call.1} parent=47 // pred_check_branch
          %514 = sbr.rel (%p512) target = $region52
        $region51: #{tpu_custom_call.1} parent=47 // pred_region
          %s515 = sand.u32 %s121, 1
          %s516 = scalar_lea.sflag [#allocation4], %s515
          %s517 = sand.u32 %s121, 1
          %s518 = smul.addr %s517, 64
          %s519 = scalar_lea.vmem [#allocation7], %s518
          %521 = dma.done %s516, 1024
        $region52: #{tpu_custom_call.1} parent=47 // pred_fallthru
          _
      $region48: #{tpu_custom_call.1} parent=5 // pred_fallthru
        _
    $region6: #{tpu_custom_call.1} parent=1 // loop_footer
      %s20 = sadd.s32 1, %s16
    $region7: #{tpu_custom_call.1} parent=1 // loop_footer_branch
      %15 = sbr.rel target = $region3
    $region8: #{tpu_custom_call.1} parent=1 // loop_exit
      _
    %522 = vsyncpa [#allocation3], 1
    %s523 = scalar_lea.sflag [#allocation3], 1
    %524 = vsyncpa %s523, 1
    %525 = vsyncpa [#allocation6], 1
    %526 = vsyncpa [#allocation4], 1
    %s527 = scalar_lea.sflag [#allocation4], 1
    %528 = vsyncpa %s527, 1

</llo_original>
